<compile_context>
chip_gen: v5e
topology: v5e:2x2
jax: 0.10.0
libtpu: 0.0.40
codegen_flags: <defaults>
</compile_context>

<pallas_src>
import functools
import math

import jax
import jax.numpy as jnp
from jax.experimental import pallas as pl
from jax.experimental.pallas import tpu as pltpu


ALIGN = 16      # bf16 sublane tile is (16, 128); keep every slab view aligned
ACT_COL = 8     # output-slab column where the fused kernel packs the action


# ----------------------------------------------------------------------------
# Parameter-slab layout helpers
# ----------------------------------------------------------------------------
def _round_up(n, m):
    return (n + m - 1) // m * m


def _slab_offsets(state_size, layer_size):
    """Row offsets of each segment inside the packed (total, layer_size) slab.

    Every segment starts on a 16-row boundary so in-kernel static slices are
    aligned to the bf16 (16, 128) packed tile (free views, no relayout).
    """
    r_w1 = 0
    r_b1 = _round_up(state_size, ALIGN)
    r_w2 = r_b1 + ALIGN
    r_b2 = r_w2 + _round_up(layer_size, ALIGN)
    r_wh = r_b2 + ALIGN
    r_bh = r_wh + _round_up(layer_size, ALIGN)
    total = r_bh + ALIGN
    return r_w1, r_b1, r_w2, r_b2, r_wh, r_bh, total


# ----------------------------------------------------------------------------
# Shared trunk: 2x (NoisyLinear + relu) + fused 3-way head, bf16 weights
# ----------------------------------------------------------------------------
def _trunk(x_ref, p_ref, *, s, l, r_b1, r_w2, r_b2, r_wh, r_bh, value_col):
    x = x_ref[...].astype(jnp.bfloat16)
    # head_1 -> relu  (effective NoisyLinear weights live in the slab)
    h1 = jnp.maximum(
        jnp.dot(x, p_ref[0:s, :], preferred_element_type=jnp.float32)
        + p_ref[r_b1:r_b1 + 1, :].astype(jnp.float32),
        0.0)
    # ff_1 -> relu
    h2 = jnp.maximum(
        jnp.dot(h1.astype(jnp.bfloat16), p_ref[r_w2:r_w2 + l, :],
                preferred_element_type=jnp.float32)
        + p_ref[r_b2:r_b2 + 1, :].astype(jnp.float32),
        0.0)
    # fused heads: one lane-dense matmul; columns [0, A) action_values,
    # [A, A+tril) matrix_entries, [A+tril] value, rest zero padding.
    y = (jnp.dot(h2.astype(jnp.bfloat16), p_ref[r_wh:r_wh + l, :],
                 preferred_element_type=jnp.float32)
         + p_ref[r_bh:r_bh + 1, :].astype(jnp.float32))
    col = jax.lax.broadcasted_iota(jnp.int32, y.shape, dimension=1)
    # tanh everywhere except the value column (tanh(0)=0 keeps the padding 0).
    return jnp.where(col == value_col, y, jnp.tanh(y))


def _naf_heads_kernel(x_ref, p_ref, o_ref, **kw):
    o_ref[...] = _trunk(x_ref, p_ref, **kw)


def _naf_heads_sample_kernel(x_ref, eps_ref, p_ref, o_ref, *, A, **kw):
    """Trunk + fused A==2 sampling epilogue (valid only for grid == 1)."""
    t = _trunk(x_ref, p_ref, **kw)
    # Closed-form 2x2 path: torch computes P = L * L.transpose(2,1)
    # ELEMENTWISE, so P is diagonal with exp(2 * diag-entry).
    e00 = t[:, A:A + 1]            # tanh(entries[:, 0])
    e11 = t[:, A + 2:A + 3]        # tanh(entries[:, 2])
    m00 = jnp.mean(jnp.exp(2.0 * e00), keepdims=True)   # (1, 1) batch mean
    m11 = jnp.mean(jnp.exp(2.0 * e11), keepdims=True)
    s00 = jax.lax.rsqrt(m00)       # cholesky(inv(P_mean)) = diag(1/sqrt(m))
    s11 = jax.lax.rsqrt(m11)
    av = t[:, 0:A]
    acol = jax.lax.broadcasted_iota(jnp.int32, av.shape, dimension=1)
    scale = jnp.where(acol == 0, s00, s11)
    action = jnp.clip(av + eps_ref[...] * scale, -1.0, 1.0)
    o_ref[...] = t                                   # av / entries / V slab
    o_ref[:, ACT_COL:ACT_COL + A] = action           # sampled, clipped action


# ----------------------------------------------------------------------------
# pallas_call wrappers
# ----------------------------------------------------------------------------
def _pick_tile(batch):
    if batch <= 256:
        return batch        # single block (also the fused-epilogue case)
    if batch <= 2048:
        return 128          # >= 2 grid steps -> both v7x TensorCores
    return 512              # amortize per-step overhead on v5e/v6e


def _vmem_limit(tile_b, state_size, layer_size, total):
    # double-buffered f32 x / f32 out + (double-buffered) bf16 slab + slack
    need = (2 * tile_b * state_size * 4
            + 2 * tile_b * layer_size * 4
            + 2 * total * layer_size * 2
            + (2 << 20))
    return max(4 << 20, int(need))


def naf_heads_fused(x, param_slab, *, state_size, action_size, layer_size):
    """General tiled path.  Returns a lane-dense (B, layer_size) f32 slab."""
    batch = x.shape[0]
    tril_n = action_size * (action_size + 1) // 2
    value_col = action_size + tril_n
    _, r_b1, r_w2, r_b2, r_wh, r_bh, total = _slab_offsets(state_size, layer_size)
    assert param_slab.shape == (total, layer_size)

    tile_b = _pick_tile(batch)
    grid = (pl.cdiv(batch, tile_b),)

    kernel = functools.partial(
        _naf_heads_kernel,
        s=state_size, l=layer_size,
        r_b1=r_b1, r_w2=r_w2, r_b2=r_b2, r_wh=r_wh, r_bh=r_bh,
        value_col=value_col)

    flops = 2 * batch * (state_size * layer_size + 2 * layer_size * layer_size)
    bytes_accessed = 4 * x.size + 2 * param_slab.size + 4 * batch * layer_size

    return pl.pallas_call(
        kernel,
        out_shape=jax.ShapeDtypeStruct((batch, layer_size), jnp.float32),
        grid=grid,
        in_specs=[
            pl.BlockSpec((tile_b, state_size), lambda i: (i, 0)),
            # constant index_map -> slab DMA'd once, stays VMEM-resident
            pl.BlockSpec((total, layer_size), lambda i: (0, 0)),
        ],
        out_specs=pl.BlockSpec((tile_b, layer_size), lambda i: (i, 0)),
        compiler_params=pltpu.CompilerParams(
            dimension_semantics=("parallel",),
            vmem_limit_bytes=_vmem_limit(tile_b, state_size, layer_size, total)),
        cost_estimate=pl.CostEstimate(
            flops=flops,
            transcendentals=batch * layer_size,
            bytes_accessed=bytes_accessed),
    )(x, param_slab)


def naf_heads_sample_fused(x, eps, param_slab, *,
                           state_size, action_size, layer_size):
    """Serving path (single block): trunk + in-kernel A==2 sampling epilogue."""
    batch = x.shape[0]
    tril_n = action_size * (action_size + 1) // 2
    value_col = action_size + tril_n
    _, r_b1, r_w2, r_b2, r_wh, r_bh, total = _slab_offsets(state_size, layer_size)
    assert action_size == 2
    assert param_slab.shape == (total, layer_size)
    assert ACT_COL >= value_col + 1 and ACT_COL + action_size <= layer_size

    kernel = functools.partial(
        _naf_heads_sample_kernel,
        A=action_size,
        s=state_size, l=layer_size,
        r_b1=r_b1, r_w2=r_w2, r_b2=r_b2, r_wh=r_wh, r_bh=r_bh,
        value_col=value_col)

    flops = 2 * batch * (state_size * layer_size + 2 * layer_size * layer_size)
    bytes_accessed = (4 * x.size + 4 * eps.size + 2 * param_slab.size
                      + 4 * batch * layer_size)

    return pl.pallas_call(
        kernel,
        out_shape=jax.ShapeDtypeStruct((batch, layer_size), jnp.float32),
        grid=(1,),
        in_specs=[
            pl.BlockSpec((batch, state_size), lambda i: (0, 0)),
            pl.BlockSpec((batch, action_size), lambda i: (0, 0)),
            pl.BlockSpec((total, layer_size), lambda i: (0, 0)),
        ],
        out_specs=pl.BlockSpec((batch, layer_size), lambda i: (0, 0)),
        compiler_params=pltpu.CompilerParams(
            dimension_semantics=("arbitrary",),
            vmem_limit_bytes=_vmem_limit(batch, state_size, layer_size, total)),
        cost_estimate=pl.CostEstimate(
            flops=flops,
            transcendentals=batch * (layer_size + 2) + 2,
            bytes_accessed=bytes_accessed),
    )(x, eps, param_slab)


# ----------------------------------------------------------------------------
# JAX glue reproducing NAF.forward (action=None branch)
# ----------------------------------------------------------------------------
def naf_forward(x, param_slab, action_size, layer_size, sample_key):
    batch, state_size = x.shape
    A = action_size
    tril_n = A * (A + 1) // 2
    value_col = A + tril_n

    Q = None  # TODO(synk): `action is not None` advantage/Q branch not implemented.

    if A == 2 and batch <= 256:
        # Serving path: single grid step, sampling fused into the kernel.
        eps = jax.random.normal(sample_key, (batch, A), dtype=jnp.float32)
        slab_out = naf_heads_sample_fused(
            x, eps, param_slab,
            state_size=state_size, action_size=A, layer_size=layer_size)
        action = slab_out[:, ACT_COL:ACT_COL + A]
        V = slab_out[:, value_col:value_col + 1]
        action_value = slab_out[:, 0:A]
        return action, Q, V, action_value[..., None]

    # General tiled path: kernel emits the head slab, sampling done in JAX.
    slab_out = naf_heads_fused(
        x, param_slab,
        state_size=state_size, action_size=A, layer_size=layer_size)
    action_value = slab_out[:, :A]                 # tanh(action_values)
    entries = slab_out[:, A:A + tril_n]            # tanh(matrix_entries)
    V = slab_out[:, value_col:value_col + 1]       # value (no tanh)

    if A == 2:
        # Closed-form 2x2 path (P = L * L^T elementwise -> diagonal).
        l00 = jnp.exp(entries[:, 0])
        l11 = jnp.exp(entries[:, 2])
        m00 = jnp.mean(l00 * l00)
        m11 = jnp.mean(l11 * l11)
        s00 = jax.lax.rsqrt(m00)
        s11 = jax.lax.rsqrt(m11)
        eps = jax.random.normal(sample_key, (batch, 2), dtype=jnp.float32)
        action = action_value + eps * jnp.stack([s00, s11])[None, :]
    else:
        # General fallback: same math as the torch reference.
        rows, cols = jnp.tril_indices(A)
        Lm = jnp.zeros((batch, A, A), jnp.float32).at[:, rows, cols].set(entries)
        d = jnp.arange(A)
        Lm = Lm.at[:, d, d].set(jnp.exp(Lm[:, d, d]))
        P = Lm * jnp.swapaxes(Lm, 2, 1)            # elementwise, per torch source
        cov = jnp.linalg.inv(jnp.mean(P, axis=0))
        chol = jnp.linalg.cholesky(cov)
        eps = jax.random.normal(sample_key, (batch, A), dtype=jnp.float32)
        action = action_value + eps @ chol.T

    action = jnp.clip(action, -1.0, 1.0)
    return action, Q, V, action_value[..., None]   # action_value.unsqueeze(-1)


# ----------------------------------------------------------------------------
# Pure-JAX reference for the deterministic head outputs (correctness check)
# ----------------------------------------------------------------------------
def naf_reference_heads(x, param_slab, action_size, layer_size):
    state_size = x.shape[1]
    _, r_b1, r_w2, r_b2, r_wh, r_bh, _ = _slab_offsets(state_size, layer_size)
    p = param_slab
    f32 = jnp.float32

    def dot(a, w):
        return jnp.dot(a.astype(jnp.bfloat16), w, preferred_element_type=f32)

    h1 = jnp.maximum(dot(x, p[0:state_size]) + p[r_b1].astype(f32), 0.0)
    h2 = jnp.maximum(dot(h1, p[r_w2:r_w2 + layer_size]) + p[r_b2].astype(f32), 0.0)
    y = dot(h2, p[r_wh:r_wh + layer_size]) + p[r_bh].astype(f32)

    A = action_size
    tril_n = A * (A + 1) // 2
    av = jnp.tanh(y[:, :A])
    entries = jnp.tanh(y[:, A:A + tril_n])
    V = y[:, A + tril_n:A + tril_n + 1]
    return av, entries, V


# ----------------------------------------------------------------------------
# Deterministic parameter construction (effective fixed-noise NoisyLinear)
# ----------------------------------------------------------------------------
def _scaled_noise(x):
    return jnp.sign(x) * jnp.sqrt(jnp.abs(x))


def init_noisy_linear(key, in_f, out_f, std_init=0.5):
    k1, k2, k3, k4 = jax.random.split(key, 4)
    mu_range = 1.0 / math.sqrt(in_f)
    w_mu = jax.random.uniform(k1, (out_f, in_f), jnp.float32, -mu_range, mu_range)
    b_mu = jax.random.uniform(k2, (out_f,), jnp.float32, -mu_range, mu_range)
    w_sigma = jnp.full((out_f, in_f), std_init / math.sqrt(in_f), jnp.float32)
    b_sigma = jnp.full((out_f,), std_init / math.sqrt(out_f), jnp.float32)
    eps_in = _scaled_noise(jax.random.normal(k3, (in_f,), jnp.float32))
    eps_out = _scaled_noise(jax.random.normal(k4, (out_f,), jnp.float32))
    w = w_mu + w_sigma * jnp.outer(eps_out, eps_in)   # effective (fixed noise)
    b = b_mu + b_sigma * eps_out
    return w, b


def init_linear(key, in_f, out_f):
    k1, k2 = jax.random.split(key)
    bound = 1.0 / math.sqrt(in_f)
    w = jax.random.uniform(k1, (out_f, in_f), jnp.float32, -bound, bound)
    b = jax.random.uniform(k2, (out_f,), jnp.float32, -bound, bound)
    return w, b


def build_naf_param_slab(key, state_size, action_size, layer_size):
    """Pack all layer weights/biases into one bf16 (total, layer_size) slab."""
    S, L, A = state_size, layer_size, action_size
    tril_n = A * (A + 1) // 2
    n_head = A + tril_n + 1
    assert L % 128 == 0 and n_head <= L, "heads must pack into the lane-dense slab"

    ks = jax.random.split(key, 5)
    w1, b1 = init_noisy_linear(ks[0], S, L)      # head_1
    w2, b2 = init_noisy_linear(ks[1], L, L)      # ff_1
    wa, ba = init_linear(ks[2], L, A)            # action_values
    we, be = init_linear(ks[3], L, tril_n)       # matrix_entries
    wv, bv = init_linear(ks[4], L, 1)            # value

    r_w1, r_b1, r_w2, r_b2, r_wh, r_bh, total = _slab_offsets(S, L)
    slab = jnp.zeros((total, L), jnp.float32)
    slab = slab.at[r_w1:r_w1 + S, :].set(w1.T)
    slab = slab.at[r_b1, :].set(b1)
    slab = slab.at[r_w2:r_w2 + L, :].set(w2.T)
    slab = slab.at[r_b2, :].set(b2)
    # Packed head weights/bias: [0,A)=action_values, [A,A+tril)=entries, [A+tril]=value.
    slab = slab.at[r_wh:r_wh + L, 0:A].set(wa.T)
    slab = slab.at[r_wh:r_wh + L, A:A + tril_n].set(we.T)
    slab = slab.at[r_wh:r_wh + L, A + tril_n].set(wv[0, :])
    slab = slab.at[r_bh, 0:A].set(ba)
    slab = slab.at[r_bh, A:A + tril_n].set(be)
    slab = slab.at[r_bh, A + tril_n].set(bv[0])
    return slab.astype(jnp.bfloat16)             # native MXU path, half the DMA


# ----------------------------------------------------------------------------
if __name__ == "__main__":
    STATE_SIZE = 16
    ACTION_SIZE = 2
    LAYER_SIZE = 128

    root = jax.random.PRNGKey(0)
    k_params, k_input, k_sample, k_input2 = jax.random.split(root, 4)

    param_slab = build_naf_param_slab(k_params, STATE_SIZE, ACTION_SIZE, LAYER_SIZE)

    fwd = jax.jit(naf_forward, static_argnums=(2, 3))

    # --- small-batch serving path: fused sampling epilogue, grid == 1 -------
    B1 = 8
    x1 = jax.random.normal(k_input, (B1, STATE_SIZE), dtype=jnp.float32)
    action, Q, V, action_value = fwd(x1, param_slab, ACTION_SIZE, LAYER_SIZE, k_sample)
    jax.block_until_ready((action, V, action_value))

    assert action.shape == (B1, ACTION_SIZE)
    assert V.shape == (B1, 1)
    assert action_value.shape == (B1, ACTION_SIZE, 1)
    assert Q is None
    assert bool(jnp.all(jnp.isfinite(action)))
    assert bool(jnp.all(jnp.isfinite(V)))
    assert bool(jnp.all(jnp.abs(action) <= 1.0))

    # Check the deterministic head outputs against a pure-JAX reference.
    av_ref, _, v_ref = naf_reference_heads(x1, param_slab, ACTION_SIZE, LAYER_SIZE)
    assert bool(jnp.allclose(action_value[..., 0], av_ref, atol=1e-2, rtol=1e-2))
    assert bool(jnp.allclose(V, v_ref, atol=1e-2, rtol=1e-2))

    # --- larger batch: general multi-step tiled path (128-row tiles) --------
    B2 = 384
    x2 = jax.random.normal(k_input2, (B2, STATE_SIZE), dtype=jnp.float32)
    action2, Q2, V2, av2 = fwd(x2, param_slab, ACTION_SIZE, LAYER_SIZE, k_sample)
    jax.block_until_ready((action2, V2, av2))

    assert action2.shape == (B2, ACTION_SIZE)
    assert V2.shape == (B2, 1)
    assert av2.shape == (B2, ACTION_SIZE, 1)
    assert Q2 is None
    assert bool(jnp.all(jnp.isfinite(action2)))
    assert bool(jnp.all(jnp.isfinite(V2)))
    assert bool(jnp.all(jnp.abs(action2) <= 1.0))

    print("KERNEL_OK")
</pallas_src>

<mosaic_0001>
module attributes {stable_mosaic.version = 11 : i64} {
  func.func @_naf_heads_sample_kernel(%arg0: i32, %arg1: memref<8x16xf32, #tpu.memory_space<vmem>>, %arg2: memref<8x2xf32, #tpu.memory_space<vmem>>, %arg3: memref<320x128xbf16, #tpu.memory_space<vmem>>, %arg4: memref<8x128xf32, #tpu.memory_space<vmem>>) attributes {dimension_semantics = [#tpu.dimension_semantics<arbitrary>], iteration_bounds = array<i64: 1>, scalar_prefetch = 0 : i64, scratch_operands = 0 : i64, tpu.core_type = #tpu.core_type<tc>, window_params = [{pipeline_mode = #tpu.pipeline_mode<synchronous>, transform_indices = @transform_0, window_bounds = array<i64: 8, 16>}, {pipeline_mode = #tpu.pipeline_mode<synchronous>, transform_indices = @transform_1, window_bounds = array<i64: 8, 2>}, {pipeline_mode = #tpu.pipeline_mode<synchronous>, transform_indices = @transform_2, window_bounds = array<i64: 320, 128>}, {pipeline_mode = #tpu.pipeline_mode<synchronous>, transform_indices = @transform_3, window_bounds = array<i64: 8, 128>}]} {
    %c0 = arith.constant 0 : index
    %c0_0 = arith.constant 0 : index
    %0 = vector.load %arg1[%c0, %c0_0] : memref<8x16xf32, #tpu.memory_space<vmem>>, vector<8x16xf32>
    %1 = arith.truncf %0 : vector<8x16xf32> to vector<8x16xbf16>
    %c0_1 = arith.constant 0 : index
    %c0_2 = arith.constant 0 : index
    %2 = vector.load %arg3[%c0_1, %c0_2] : memref<320x128xbf16, #tpu.memory_space<vmem>>, vector<16x128xbf16>
    %cst = arith.constant dense<0.000000e+00> : vector<8x128xf32>
    %3 = tpu.matmul %1, %2, %cst {dimension_numbers = #tpu.dot_dimension_numbers<[1], [0], [0], [1], [0, 0, 1, 1], [], []>} : vector<8x16xbf16>, vector<16x128xbf16>, vector<8x128xf32> -> vector<8x128xf32>
    %c16 = arith.constant 16 : index
    %c0_3 = arith.constant 0 : index
    %4 = vector.load %arg3[%c16, %c0_3] : memref<320x128xbf16, #tpu.memory_space<vmem>>, vector<1x128xbf16>
    %5 = arith.extf %4 : vector<1x128xbf16> to vector<1x128xf32>
    %6 = vector.broadcast %5 : vector<1x128xf32> to vector<8x128xf32>
    %7 = arith.addf %3, %6 : vector<8x128xf32>
    %cst_4 = arith.constant 0.000000e+00 : f32
    %8 = vector.broadcast %cst_4 : f32 to vector<8x128xf32>
    %9 = arith.maximumf %7, %8 : vector<8x128xf32>
    %10 = arith.truncf %9 : vector<8x128xf32> to vector<8x128xbf16>
    %c32 = arith.constant 32 : index
    %c0_5 = arith.constant 0 : index
    %11 = vector.load %arg3[%c32, %c0_5] : memref<320x128xbf16, #tpu.memory_space<vmem>>, vector<128x128xbf16>
    %cst_6 = arith.constant dense<0.000000e+00> : vector<8x128xf32>
    %12 = tpu.matmul %10, %11, %cst_6 {dimension_numbers = #tpu.dot_dimension_numbers<[1], [0], [0], [1], [0, 0, 1, 1], [], []>} : vector<8x128xbf16>, vector<128x128xbf16>, vector<8x128xf32> -> vector<8x128xf32>
    %c160 = arith.constant 160 : index
    %c0_7 = arith.constant 0 : index
    %13 = vector.load %arg3[%c160, %c0_7] : memref<320x128xbf16, #tpu.memory_space<vmem>>, vector<1x128xbf16>
    %14 = arith.extf %13 : vector<1x128xbf16> to vector<1x128xf32>
    %15 = vector.broadcast %14 : vector<1x128xf32> to vector<8x128xf32>
    %16 = arith.addf %12, %15 : vector<8x128xf32>
    %cst_8 = arith.constant 0.000000e+00 : f32
    %17 = vector.broadcast %cst_8 : f32 to vector<8x128xf32>
    %18 = arith.maximumf %16, %17 : vector<8x128xf32>
    %19 = arith.truncf %18 : vector<8x128xf32> to vector<8x128xbf16>
    %c176 = arith.constant 176 : index
    %c0_9 = arith.constant 0 : index
    %20 = vector.load %arg3[%c176, %c0_9] : memref<320x128xbf16, #tpu.memory_space<vmem>>, vector<128x128xbf16>
    %cst_10 = arith.constant dense<0.000000e+00> : vector<8x128xf32>
    %21 = tpu.matmul %19, %20, %cst_10 {dimension_numbers = #tpu.dot_dimension_numbers<[1], [0], [0], [1], [0, 0, 1, 1], [], []>} : vector<8x128xbf16>, vector<128x128xbf16>, vector<8x128xf32> -> vector<8x128xf32>
    %c304 = arith.constant 304 : index
    %c0_11 = arith.constant 0 : index
    %22 = vector.load %arg3[%c304, %c0_11] : memref<320x128xbf16, #tpu.memory_space<vmem>>, vector<1x128xbf16>
    %23 = arith.extf %22 : vector<1x128xbf16> to vector<1x128xf32>
    %24 = vector.broadcast %23 : vector<1x128xf32> to vector<8x128xf32>
    %25 = arith.addf %21, %24 : vector<8x128xf32>
    %26 = tpu.iota {dimensions = array<i32: 1>} : vector<8x128xi32>
    %c5_i32 = arith.constant 5 : i32
    %27 = vector.broadcast %c5_i32 : i32 to vector<8x128xi32>
    %28 = arith.cmpi eq, %26, %27 : vector<8x128xi32>
    %29 = math.tanh %25 : vector<8x128xf32>
    %30 = arith.select %28, %25, %29 : vector<8x128xi1>, vector<8x128xf32>
    %31 = vector.extract_strided_slice %30 {offsets = [0, 2], sizes = [8, 1], strides = [1, 1]} : vector<8x128xf32> to vector<8x1xf32>
    %32 = vector.extract_strided_slice %30 {offsets = [0, 4], sizes = [8, 1], strides = [1, 1]} : vector<8x128xf32> to vector<8x1xf32>
    %cst_12 = arith.constant 2.000000e+00 : f32
    %33 = vector.broadcast %cst_12 : f32 to vector<8x1xf32>
    %34 = arith.mulf %33, %31 : vector<8x1xf32>
    %35 = math.exp %34 : vector<8x1xf32>
    %36 = vector.shape_cast %35 : vector<8x1xf32> to vector<1x8x1xf32>
    %cst_13 = arith.constant dense<0.000000e+00> : vector<1xf32>
    %37 = vector.multi_reduction <add>, %36, %cst_13 [1, 2] : vector<1x8x1xf32> to vector<1xf32>
    %38 = vector.shape_cast %37 : vector<1xf32> to vector<1x1x1xf32>
    %39 = vector.extract %38[0, 0, 0] : f32 from vector<1x1x1xf32>
    %40 = vector.broadcast %39 : f32 to vector<1x1xf32>
    %cst_14 = arith.constant 8.000000e+00 : f32
    %41 = vector.broadcast %cst_14 : f32 to vector<1x1xf32>
    %42 = arith.divf %40, %41 : vector<1x1xf32>
    %cst_15 = arith.constant 2.000000e+00 : f32
    %43 = vector.broadcast %cst_15 : f32 to vector<8x1xf32>
    %44 = arith.mulf %43, %32 : vector<8x1xf32>
    %45 = math.exp %44 : vector<8x1xf32>
    %46 = vector.shape_cast %45 : vector<8x1xf32> to vector<1x8x1xf32>
    %cst_16 = arith.constant dense<0.000000e+00> : vector<1xf32>
    %47 = vector.multi_reduction <add>, %46, %cst_16 [1, 2] : vector<1x8x1xf32> to vector<1xf32>
    %48 = vector.shape_cast %47 : vector<1xf32> to vector<1x1x1xf32>
    %49 = vector.extract %48[0, 0, 0] : f32 from vector<1x1x1xf32>
    %50 = vector.broadcast %49 : f32 to vector<1x1xf32>
    %cst_17 = arith.constant 8.000000e+00 : f32
    %51 = vector.broadcast %cst_17 : f32 to vector<1x1xf32>
    %52 = arith.divf %50, %51 : vector<1x1xf32>
    %53 = math.rsqrt %42 : vector<1x1xf32>
    %54 = math.rsqrt %52 : vector<1x1xf32>
    %55 = vector.extract_strided_slice %30 {offsets = [0, 0], sizes = [8, 2], strides = [1, 1]} : vector<8x128xf32> to vector<8x2xf32>
    %56 = tpu.iota {dimensions = array<i32: 1>} : vector<8x2xi32>
    %c0_i32 = arith.constant 0 : i32
    %57 = vector.broadcast %c0_i32 : i32 to vector<8x2xi32>
    %58 = arith.cmpi eq, %56, %57 : vector<8x2xi32>
    %59 = vector.shape_cast %53 : vector<1x1xf32> to vector<1x1xf32>
    %60 = vector.broadcast %59 : vector<1x1xf32> to vector<8x2xf32>
    %61 = vector.shape_cast %54 : vector<1x1xf32> to vector<1x1xf32>
    %62 = vector.broadcast %61 : vector<1x1xf32> to vector<8x2xf32>
    %63 = arith.select %58, %60, %62 : vector<8x2xi1>, vector<8x2xf32>
    %c0_18 = arith.constant 0 : index
    %c0_19 = arith.constant 0 : index
    %64 = vector.load %arg2[%c0_18, %c0_19] : memref<8x2xf32, #tpu.memory_space<vmem>>, vector<8x2xf32>
    %65 = arith.mulf %64, %63 : vector<8x2xf32>
    %66 = arith.addf %55, %65 : vector<8x2xf32>
    %cst_20 = arith.constant -1.000000e+00 : f32
    %cst_21 = arith.constant 1.000000e+00 : f32
    %67 = vector.broadcast %cst_20 : f32 to vector<8x2xf32>
    %68 = arith.maximumf %67, %66 : vector<8x2xf32>
    %69 = vector.broadcast %cst_21 : f32 to vector<8x2xf32>
    %70 = arith.minimumf %69, %68 : vector<8x2xf32>
    %c0_22 = arith.constant 0 : index
    %c0_23 = arith.constant 0 : index
    %71 = vector.load %arg4[%c0_22, %c0_23] : memref<8x128xf32, #tpu.memory_space<vmem>>, vector<8x128xf32>
    tpu.vector_store %arg4[%c0_22, %c0_23], %30 {strides = array<i32>} : memref<8x128xf32, #tpu.memory_space<vmem>>, vector<8x128xf32>,
    %c0_24 = arith.constant 0 : index
    %c8 = arith.constant 8 : index
    %72 = vector.load %arg4[%c0_24, %c8] : memref<8x128xf32, #tpu.memory_space<vmem>>, vector<8x2xf32>
    tpu.vector_store %arg4[%c0_24, %c8], %70 {strides = array<i32>} : memref<8x128xf32, #tpu.memory_space<vmem>>, vector<8x2xf32>,
    return
  }
  func.func @transform_0(%arg0: i32) -> (i32, i32) {
    %c0_i32 = arith.constant 0 : i32
    %c0_i32_0 = arith.constant 0 : i32
    %c0_i32_1 = arith.constant 0 : i32
    return %c0_i32, %c0_i32_0 : i32, i32
  }
  func.func @transform_1(%arg0: i32) -> (i32, i32) {
    %c0_i32 = arith.constant 0 : i32
    %c0_i32_0 = arith.constant 0 : i32
    %c0_i32_1 = arith.constant 0 : i32
    return %c0_i32, %c0_i32_0 : i32, i32
  }
  func.func @transform_2(%arg0: i32) -> (i32, i32) {
    %c0_i32 = arith.constant 0 : i32
    %c0_i32_0 = arith.constant 0 : i32
    %c0_i32_1 = arith.constant 0 : i32
    return %c0_i32, %c0_i32_0 : i32, i32
  }
  func.func @transform_3(%arg0: i32) -> (i32, i32) {
    %c0_i32 = arith.constant 0 : i32
    %c0_i32_0 = arith.constant 0 : i32
    %c0_i32_1 = arith.constant 0 : i32
    return %c0_i32, %c0_i32_0 : i32, i32
  }
}

</mosaic_0001>

<llo_original>
// kernel: naf_forward.1
$region0: #{naf_forward.1}
  #allocation0 [shape = 'u32[]', space=smem, size = 0x4, offset = 0x4, fixed_abs, tag = 'smem constant byte address 0x4 - core index']
  #allocation1 [shape = 'u32[72,128]{1,0:T(1,128)}', space=vmem, size = 0x9000, scoped, tag = 'internal scratch']
  %s0 = inlined_call_operand.vmem [shape: f32[8,16], index: 0, kind: input, shape index: {}]
  %s1 = inlined_call_operand.vmem [shape: f32[8,2], index: 1, kind: input, shape index: {}]
  %s2 = inlined_call_operand.hbm [shape: bf16[320,128], index: 2, kind: input, shape index: {}]
  %s3 = inlined_call_operand.vmem [shape: f32[8,128], index: 3, kind: output, shape index: {}]
  %s4 = sld [smem:[#allocation0]]
  $region26: #{naf_forward.1} parent=0
    _
  %s6 = ssub.s32 1, %s4
  %s7 = scalar_select 0, %s6, %s4
  $region1: #{naf_forward.1} parent=0
    #allocation2 [shape = 'u8[81920]{0}', space=vmem, size = 0x14000, scoped, tag = 'input window, operand 2, single buffered']
    #allocation3 [shape = 's32[1]{0}', space=sflag, size = 0x4, scoped, tag = 'scoped memory for naf_forward.1']
    %8 = vsyncpa [#allocation3], 0
    // Predicated region
    $region2: #{naf_forward.1} parent=1 // pred_check
      _
    $region3: #{naf_forward.1} parent=1 // pred_check_branch
      %10 = sbr.rel (0) target = $region5
    $region4: #{naf_forward.1} parent=1 // pred_region
      _
    $region5: #{naf_forward.1} parent=1 // pred_fallthru
      _
    // Predicated region
    $region6: #{naf_forward.1} parent=1 // pred_check
      _
    $region7: #{naf_forward.1} parent=1 // pred_check_branch
      %12 = sbr.rel (0) target = $region9
    $region8: #{naf_forward.1} parent=1 // pred_region
      _
    $region9: #{naf_forward.1} parent=1 // pred_fallthru
      _
    // Predicated region
    $region10: #{naf_forward.1} parent=1 // pred_check
      _
    $region11: #{naf_forward.1} parent=1 // pred_check_branch
      %14 = sbr.rel (0) target = $region13
    $region12: #{naf_forward.1} parent=1 // pred_region
      %16 = vsyncadd [#allocation3], 0
      %s17 = sshll.u32 %s2, 4
      %s18 = int_to_ptr.hbm [resolvable:$true] %s17
      %s19 = sshll.u32 [#allocation2], 4
      %s20 = int_to_ptr.vmem [resolvable:$true] %s19
      %25 = dma.hbm_to_vmem [thread:$0]  %s18, 2560, %s20, [#allocation3], 64, 64, 4
    $region13: #{naf_forward.1} parent=1 // pred_fallthru
      _
    // Predicated region
    $region14: #{naf_forward.1} parent=1 // pred_check
      _
    $region15: #{naf_forward.1} parent=1 // pred_check_branch
      %27 = sbr.rel (0) target = $region17
    $region16: #{naf_forward.1} parent=1 // pred_region
      %29 = dma.done [#allocation3], 2560
    $region17: #{naf_forward.1} parent=1 // pred_fallthru
      _
    %v31 = vld [vmem:[%s0] sm:$0xff]
    %v32 = vpack.c.bf16 %v31, %v31
    %v33 = vld [vmem:[#allocation2] sm:$0xf]
    %v34 = vld [vmem:[#allocation2 + $0x4] sm:$0xf]
    %v35 = vld [vmem:[#allocation2 + $0x8] sm:$0x1]
    %v36 = vunpack.c.l.bf16 %v35
    %v37 = vperm.slane %v36, 0
    %v40 = vunpack.c.l.b16 %v33
    %v41 = vunpack.c.l.b16 %v34
    %v42 = vpack.c.b16 %v41, %v40
    %vm44 = vcmask 130048
    %v46 = vsel %vm44, %v32, 0
    %48 = vmatpush.bf16.msra.mxu0 0
    %49 = vmatpush.bf16.msra.mxu0 0
    %50 = vmatpush.bf16.msra.mxu0 0
    %51 = vmatpush.bf16.msra.mxu0 0
    %52 = vmatpush.bf16.msra.mxu0 0
    %53 = vmatpush.bf16.msra.mxu0 0
    %54 = vmatpush.bf16.msra.mxu0 0
    %55 = vmatpush.bf16.msra.mxu0 %v42
    %56 = vmatmul.bf16.gmra.mxu0 %v46
    %v57 = vpop.f32.mrf.mxu0
    %v58 = vadd.f32 %v37, %v57
    %v59 = vpop.f32.mrf.mxu0
    %60 = vdwg.mxu0
    %v61 = vmax.f32 %v58, 0.0
    %v62 = vpack.c.bf16 %v61, %v61
    %v63 = vld [vmem:[#allocation2 + $0x10] sm:$0xf]
    %v64 = vld [vmem:[#allocation2 + $0x14] sm:$0xf]
    %v65 = vld [vmem:[#allocation2 + $0x18] sm:$0xf]
    %v66 = vld [vmem:[#allocation2 + $0x1c] sm:$0xf]
    %v67 = vld [vmem:[#allocation2 + $0x20] sm:$0xf]
    %v68 = vld [vmem:[#allocation2 + $0x24] sm:$0xf]
    %v69 = vld [vmem:[#allocation2 + $0x28] sm:$0xf]
    %v70 = vld [vmem:[#allocation2 + $0x2c] sm:$0xf]
    %v71 = vld [vmem:[#allocation2 + $0x30] sm:$0xf]
    %v72 = vld [vmem:[#allocation2 + $0x34] sm:$0xf]
    %v73 = vld [vmem:[#allocation2 + $0x38] sm:$0xf]
    %v74 = vld [vmem:[#allocation2 + $0x3c] sm:$0xf]
    %v75 = vld [vmem:[#allocation2 + $0x40] sm:$0xf]
    %v76 = vld [vmem:[#allocation2 + $0x44] sm:$0xf]
    %v77 = vld [vmem:[#allocation2 + $0x48] sm:$0xf]
    %v78 = vld [vmem:[#allocation2 + $0x4c] sm:$0xf]
    %v79 = vld [vmem:[#allocation2 + $0x50] sm:$0x1]
    %v80 = vunpack.c.l.bf16 %v79
    %v81 = vperm.slane %v80, 0
    %v98 = vunpack.c.l.b16 %v63
    %v99 = vunpack.c.l.b16 %v64
    %v100 = vunpack.c.l.b16 %v65
    %v101 = vunpack.c.l.b16 %v66
    %v102 = vunpack.c.l.b16 %v67
    %v103 = vunpack.c.l.b16 %v68
    %v104 = vunpack.c.l.b16 %v69
    %v105 = vunpack.c.l.b16 %v70
    %v106 = vunpack.c.l.b16 %v71
    %v107 = vunpack.c.l.b16 %v72
    %v108 = vunpack.c.l.b16 %v73
    %v109 = vunpack.c.l.b16 %v74
    %v110 = vunpack.c.l.b16 %v75
    %v111 = vunpack.c.l.b16 %v76
    %v112 = vunpack.c.l.b16 %v77
    %v113 = vunpack.c.l.b16 %v78
    %v114 = vpack.c.b16 %v99, %v98
    %v115 = vpack.c.b16 %v101, %v100
    %v116 = vpack.c.b16 %v103, %v102
    %v117 = vpack.c.b16 %v105, %v104
    %v118 = vpack.c.b16 %v107, %v106
    %v119 = vpack.c.b16 %v109, %v108
    %v120 = vpack.c.b16 %v111, %v110
    %v121 = vpack.c.b16 %v113, %v112
    %130 = vmatpush.bf16.msra.mxu0 %v121
    %131 = vmatpush.bf16.msra.mxu0 %v120
    %132 = vmatpush.bf16.msra.mxu0 %v119
    %133 = vmatpush.bf16.msra.mxu0 %v118
    %134 = vmatpush.bf16.msra.mxu0 %v117
    %135 = vmatpush.bf16.msra.mxu0 %v116
    %136 = vmatpush.bf16.msra.mxu0 %v115
    %137 = vmatpush.bf16.msra.mxu0 %v114
    %138 = vmatmul.bf16.gmra.mxu0 %v62
    %v139 = vpop.f32.mrf.mxu0
    %v140 = vadd.f32 %v81, %v139
    %v141 = vpop.f32.mrf.mxu0
    %142 = vdwg.mxu0
    %v143 = vmax.f32 %v140, 0.0
    %v144 = vpack.c.bf16 %v143, %v143
    %v145 = vld [vmem:[#allocation2 + $0x58] sm:$0xf]
    %v146 = vld [vmem:[#allocation2 + $0x5c] sm:$0xf]
    %v147 = vld [vmem:[#allocation2 + $0x60] sm:$0xf]
    %v148 = vld [vmem:[#allocation2 + $0x64] sm:$0xf]
    %v149 = vld [vmem:[#allocation2 + $0x68] sm:$0xf]
    %v150 = vld [vmem:[#allocation2 + $0x6c] sm:$0xf]
    %v151 = vld [vmem:[#allocation2 + $0x70] sm:$0xf]
    %v152 = vld [vmem:[#allocation2 + $0x74] sm:$0xf]
    %v153 = vld [vmem:[#allocation2 + $0x78] sm:$0xf]
    %v154 = vld [vmem:[#allocation2 + $0x7c] sm:$0xf]
    %v155 = vld [vmem:[#allocation2 + $0x80] sm:$0xf]
    %v156 = vld [vmem:[#allocation2 + $0x84] sm:$0xf]
    %v157 = vld [vmem:[#allocation2 + $0x88] sm:$0xf]
    %v158 = vld [vmem:[#allocation2 + $0x8c] sm:$0xf]
    %v159 = vld [vmem:[#allocation2 + $0x90] sm:$0xf]
    %v160 = vld [vmem:[#allocation2 + $0x94] sm:$0xf]
    %v161 = vld [vmem:[#allocation2 + $0x98] sm:$0x1]
    %v162 = vunpack.c.l.bf16 %v161
    %v163 = vperm.slane %v162, 0
    %v180 = vunpack.c.l.b16 %v145
    %v181 = vunpack.c.l.b16 %v146
    %v182 = vunpack.c.l.b16 %v147
    %v183 = vunpack.c.l.b16 %v148
    %v184 = vunpack.c.l.b16 %v149
    %v185 = vunpack.c.l.b16 %v150
    %v186 = vunpack.c.l.b16 %v151
    %v187 = vunpack.c.l.b16 %v152
    %v188 = vunpack.c.l.b16 %v153
    %v189 = vunpack.c.l.b16 %v154
    %v190 = vunpack.c.l.b16 %v155
    %v191 = vunpack.c.l.b16 %v156
    %v192 = vunpack.c.l.b16 %v157
    %v193 = vunpack.c.l.b16 %v158
    %v194 = vunpack.c.l.b16 %v159
    %v195 = vunpack.c.l.b16 %v160
    %v196 = vpack.c.b16 %v181, %v180
    %v197 = vpack.c.b16 %v183, %v182
    %v198 = vpack.c.b16 %v185, %v184
    %v199 = vpack.c.b16 %v187, %v186
    %v200 = vpack.c.b16 %v189, %v188
    %v201 = vpack.c.b16 %v191, %v190
    %v202 = vpack.c.b16 %v193, %v192
    %v203 = vpack.c.b16 %v195, %v194
    %212 = vmatpush.bf16.msra.mxu0 %v203
    %213 = vmatpush.bf16.msra.mxu0 %v202
    %214 = vmatpush.bf16.msra.mxu0 %v201
    %215 = vmatpush.bf16.msra.mxu0 %v200
    %216 = vmatpush.bf16.msra.mxu0 %v199
    %217 = vmatpush.bf16.msra.mxu0 %v198
    %218 = vmatpush.bf16.msra.mxu0 %v197
    %219 = vmatpush.bf16.msra.mxu0 %v196
    %220 = vmatmul.bf16.gmra.mxu0 %v144
    %v221 = vpop.f32.mrf.mxu0
    %v222 = vadd.f32 %v163, %v221
    %v223 = vpop.f32.mrf.mxu0
    %224 = vdwg.mxu0
    %v225 = vlaneseq
    %v226 = vand.u32 %v225, 127
    %vm227 = vcmp.eq.s32.totalorder %v226, 5
    %v228 = vtanh.pop %v222
    %v229 = vsel %vm227, %v222, %v228
    %v230 = vmul.f32 %v229, 2.0
    %v231 = vmul.f32 %v230, 1.442695
    %v232 = vpow.pop %v231
    %234 = vrot.lane.b32.xlu0 %v232, 126
    %v235 = vpop.permute.xlu0 %234
    %vm237 = vcmask 7168
    %v238 = vsel %vm237, %v235, 0.0
    %239 = vadd.xlane.f32.xlu0 %v238
    %v240 = vpop.xlane.xlu0 %239
    %v241 = vrot.slane %v240, 4
    %v242 = vadd.f32 %v240, %v241
    %v243 = vrot.slane %v242, 2
    %v244 = vadd.f32 %v242, %v243
    %v245 = vrot.slane %v244, 1
    %v246 = vadd.f32 %v244, %v245
    %s247 = vtos %v246
    %v248 = vstv %s247
    %v249 = vrcp.pop 8.0
    %v250 = vmul.f32 8.0, %v249
    %v251 = vsub.f32 1.0, %v250
    %v252 = vmul.f32 %v249, %v251
    %v253 = vadd.f32 %v249, %v252
    %vm254 = vweird.f32 %v249
    %v255 = vsel %vm254, %v249, %v253
    %v256 = vmul.f32 %v248, %v255
    %257 = vrot.lane.b32.xlu0 %v232, 124
    %v258 = vpop.permute.xlu0 %257
    %v260 = vsel %vm237, %v258, 0.0
    %261 = vadd.xlane.f32.xlu0 %v260
    %v262 = vpop.xlane.xlu0 %261
    %v263 = vrot.slane %v262, 4
    %v264 = vadd.f32 %v262, %v263
    %v265 = vrot.slane %v264, 2
    %v266 = vadd.f32 %v264, %v265
    %v267 = vrot.slane %v266, 1
    %v268 = vadd.f32 %v266, %v267
    %s269 = vtos %v268
    %v270 = vstv %s269
    %v271 = vmul.f32 %v270, %v255
    %v272 = vrsqrt.pop %v256
    %v273 = vmul.f32 %v272, %v256
    %v274 = vmul.f32 %v273, %v272
    %v275 = vmul.f32 0.5, %v274
    %v276 = vsub.f32 1.5, %v275
    %v277 = vmul.f32 %v272, %v276
    %vm278 = vweird.f32 %v256
    %vm279 = vweird.f32 %v272
    %vm280 = vmor %vm278, %vm279
    %v281 = vsel %vm280, %v272, %v277
    %v282 = vrsqrt.pop %v271
    %v283 = vmul.f32 %v282, %v271
    %v284 = vmul.f32 %v283, %v282
    %v285 = vmul.f32 0.5, %v284
    %v286 = vsub.f32 1.5, %v285
    %v287 = vmul.f32 %v282, %v286
    %vm288 = vweird.f32 %v271
    %vm289 = vweird.f32 %v282
    %vm290 = vmor %vm288, %vm289
    %v291 = vsel %vm290, %v282, %v287
    %vm292 = vcmp.eq.s32.totalorder %v226, 0
    %v293 = vsel %vm292, %v281, %v291
    %v294 = vld [vmem:[%s1] sm:$0xff]
    %v295 = vmul.f32 %v294, %v293
    %v296 = vadd.f32 %v229, %v295
    %v297 = vmax.f32 %v296, -1.0
    %v298 = vmin.f32 %v297, 1.0
    %299 = vst [vmem:[%s3] sm:$0xff] %v229
    %301 = vrot.lane.b32.xlu0 %v298, 8
    %v302 = vpop.permute.xlu0 %301
    %vm304 = vcmask 80960
    %305 = vst.msk [vmem:[%s3] sm:$0xff] %vm304, %v302
    // Predicated region
    $region18: #{naf_forward.1} parent=1 // pred_check
      _
    $region19: #{naf_forward.1} parent=1 // pred_check_branch
      %307 = sbr.rel (0) target = $region21
    $region20: #{naf_forward.1} parent=1 // pred_region
      _
    $region21: #{naf_forward.1} parent=1 // pred_fallthru
      _
    // Predicated region
    $region22: #{naf_forward.1} parent=1 // pred_check
      _
    $region23: #{naf_forward.1} parent=1 // pred_check_branch
      %309 = sbr.rel (0) target = $region25
    $region24: #{naf_forward.1} parent=1 // pred_region
      _
    $region25: #{naf_forward.1} parent=1 // pred_fallthru
      _
    %310 = vsyncpa [#allocation3], 1

</llo_original>
